<compile_context>
chip_gen: v6e
topology: v6e:2x2x1
jax: 0.10.0
libtpu: 0.0.40
codegen_flags: <defaults>
</compile_context>

<pallas_src>
import jax
import jax.numpy as jnp
from jax.experimental import pallas as pl
from jax.experimental.pallas import tpu as pltpu


def _conv3x3_relu_kernel(x_ref, w_ref, b_ref, o_ref):
    """One batch element per grid step, fully lane-dense layout.

    x_ref: (1, H, W*Cin)       bf16 activations, lane index = w*Cin + ci
    w_ref: (3, W*Cin, W*Cout)  bf16 band matrices, one per kernel row dy
                               (dx taps + horizontal SAME padding folded in)
    b_ref: (1, W*Cout)         f32 bias tiled across W
    o_ref: (1, H, W*Cout)      f32 output, lane-dense
    """
    H = o_ref.shape[1]
    WCout = o_ref.shape[2]
    x = x_ref[0]                                           # (H, W*Cin), bf16

    # dy == 1 (center kernel row): input row h contributes to output row h.
    # Fold the bias into the accumulator init.
    acc = jnp.dot(x, w_ref[1], preferred_element_type=jnp.float32) + b_ref[...]

    zero_row = jnp.zeros((1, WCout), jnp.float32)

    # dy == 0 (kernel row above): output row h reads input row h-1; output
    # row 0 sees the zero halo (vertical SAME padding).  Compute per-input-row
    # contributions with one matmul, shift down one sublane, feed a zero row.
    top = jnp.dot(x, w_ref[0], preferred_element_type=jnp.float32)
    acc = acc + jnp.concatenate([zero_row, top[:H - 1, :]], axis=0)

    # dy == 2 (kernel row below): output row h reads input row h+1; the last
    # output row sees the zero halo.
    bot = jnp.dot(x, w_ref[2], preferred_element_type=jnp.float32)
    acc = acc + jnp.concatenate([bot[1:, :], zero_row], axis=0)

    o_ref[0] = jnp.maximum(acc, 0.0).astype(o_ref.dtype)


def _build_band_weights(weight, W):
    """(3, 3, Cin, Cout) conv weights -> (3, W*Cin, W*Cout) band matrices.

    band[dy][(w + dx - 1)*Cin + ci, w*Cout + co] = weight[dy, dx, ci, co];
    out-of-range rows (w + dx - 1 outside [0, W)) are simply absent, which
    implements the horizontal SAME zero padding implicitly.
    """
    kh, kw, Cin, Cout = weight.shape
    mats = []
    for dy in range(kh):
        m = jnp.zeros((W * Cin, W * Cout), jnp.float32)
        for dx in range(kw):
            sel = jnp.eye(W, k=1 - dx, dtype=jnp.float32)  # sel[w+dx-1, w] = 1
            m = m + jnp.kron(sel, weight[dy, dx].astype(jnp.float32))
        mats.append(m)
    return jnp.stack(mats)                                  # (3, W*Cin, W*Cout)


def _model_pallas(x_nchw, weight, bias):
    """Synthetic `self.model`: 3x3 SAME conv (Cin -> Cout) + bias + ReLU."""
    N, Cin, H, W = x_nchw.shape
    Cout = weight.shape[3]

    # Wrapper-side layout plumbing only: pack channels onto the lane axis so
    # both the kernel input (W*Cin lanes) and output (W*Cout lanes) are
    # lane-dense.  bf16 activations / weights, f32 accumulation.
    x_packed = jnp.transpose(x_nchw, (0, 2, 3, 1)).reshape(N, H, W * Cin)
    x_packed = x_packed.astype(jnp.bfloat16)

    w_band = _build_band_weights(weight, W).astype(jnp.bfloat16)
    b_tiled = jnp.tile(bias.astype(jnp.float32), W).reshape(1, W * Cout)

    out_packed = pl.pallas_call(
        _conv3x3_relu_kernel,
        out_shape=jax.ShapeDtypeStruct((N, H, W * Cout), jnp.float32),
        grid_spec=pltpu.PrefetchScalarGridSpec(
            num_scalar_prefetch=0,
            grid=(N,),
            in_specs=[
                pl.BlockSpec((1, H, W * Cin), lambda n: (n, 0, 0)),
                pl.BlockSpec((3, W * Cin, W * Cout), lambda n: (0, 0, 0)),
                pl.BlockSpec((1, W * Cout), lambda n: (0, 0)),
            ],
            out_specs=pl.BlockSpec((1, H, W * Cout), lambda n: (n, 0, 0)),
        ),
        compiler_params=pltpu.CompilerParams(
            dimension_semantics=("parallel",)),
    )(x_packed, w_band, b_tiled)

    # Unpack: (N, H, W*Cout) -> NCHW to match the PyTorch convention.
    out = out_packed.reshape(N, H, W, Cout)
    return jnp.transpose(out, (0, 3, 1, 2)).astype(x_nchw.dtype)


class Handle:
    """JAX/Pallas port of TSCUNet.Handle (validation + model application)."""

    def __init__(self, model, device):
        self.model = model
        self.device = device  # device placement is handled by JAX; kept for parity

    def forward(self, input_tensor):
        # Mirror the PyTorch validation exactly (including its redundancy).
        if (input_tensor.ndim < 4 or input_tensor.ndim < 3
                or input_tensor.shape[2] < 32 or input_tensor.shape[3] < 32):
            raise ValueError(
                "Please keep the following in mind while initializing the model:\n"
                " * Input tensor must be 4D or 3D and must have at least one channel and one time step!\n"
                " * Input tensor's height and width must be at least 32!\n")
        return self.model(input_tensor)

    __call__ = forward


if __name__ == "__main__":
    key = jax.random.PRNGKey(0)
    k_x, k_w, k_b = jax.random.split(key, 3)

    # Handle's validation requires H, W >= 32.
    N, Cin, H, W = 2, 4, 32, 32
    Cout = 4

    x = jax.random.normal(k_x, (N, Cin, H, W), dtype=jnp.float32)

    # Deterministic synthetic conv parameters, layout (kh, kw, Cin, Cout).
    weight = jax.random.normal(k_w, (3, 3, Cin, Cout), dtype=jnp.float32) * 0.1
    bias = jax.random.normal(k_b, (Cout,), dtype=jnp.float32) * 0.1

    model = lambda inp: _model_pallas(inp, weight, bias)
    handle = Handle(model, device="tpu")

    out = jax.block_until_ready(handle(x))

    # Reference: same bf16 quantization of activations/weights, f32 accumulate.
    xq = x.astype(jnp.bfloat16).astype(jnp.float32)
    wq = weight.astype(jnp.bfloat16).astype(jnp.float32)
    w_oihw = jnp.transpose(wq, (3, 2, 0, 1))                 # (Cout, Cin, kh, kw)
    ref = jax.lax.conv_general_dilated(
        xq, w_oihw, window_strides=(1, 1), padding="SAME",
        dimension_numbers=("NCHW", "OIHW", "NCHW"),
        precision=jax.lax.Precision.HIGHEST)
    ref = jnp.maximum(ref + bias[None, :, None, None], 0.0)

    assert out.shape == (N, Cout, H, W)
    assert jnp.allclose(out, ref, atol=1e-2, rtol=1e-2), \
        float(jnp.max(jnp.abs(out - ref)))

    print("KERNEL_OK")
</pallas_src>

<mosaic_0001>
module attributes {stable_mosaic.version = 11 : i64} {
  func.func @_conv3x3_relu_kernel(%arg0: i32, %arg1: memref<1x32x128xbf16, #tpu.memory_space<vmem>>, %arg2: memref<3x128x128xbf16, #tpu.memory_space<vmem>>, %arg3: memref<1x128xf32, #tpu.memory_space<vmem>>, %arg4: memref<1x32x128xf32, #tpu.memory_space<vmem>>) attributes {dimension_semantics = [#tpu.dimension_semantics<parallel>], iteration_bounds = array<i64: 2>, scalar_prefetch = 0 : i64, scratch_operands = 0 : i64, tpu.core_type = #tpu.core_type<tc>, window_params = [{transform_indices = @transform_0, window_bounds = array<i64: 1, 32, 128>}, {pipeline_mode = #tpu.pipeline_mode<synchronous>, transform_indices = @transform_1, window_bounds = array<i64: 3, 128, 128>}, {pipeline_mode = #tpu.pipeline_mode<synchronous>, transform_indices = @transform_2, window_bounds = array<i64: 1, 128>}, {transform_indices = @transform_3, window_bounds = array<i64: 1, 32, 128>}]} {
    %c0 = arith.constant 0 : index
    %c0_0 = arith.constant 0 : index
    %c0_1 = arith.constant 0 : index
    %0 = vector.load %arg1[%c0, %c0_0, %c0_1] : memref<1x32x128xbf16, #tpu.memory_space<vmem>>, vector<1x32x128xbf16>
    %1 = vector.shape_cast %0 : vector<1x32x128xbf16> to vector<32x128xbf16>
    %c1 = arith.constant 1 : index
    %c0_2 = arith.constant 0 : index
    %c0_3 = arith.constant 0 : index
    %2 = vector.load %arg2[%c1, %c0_2, %c0_3] : memref<3x128x128xbf16, #tpu.memory_space<vmem>>, vector<1x128x128xbf16>
    %3 = vector.shape_cast %2 : vector<1x128x128xbf16> to vector<128x128xbf16>
    %cst = arith.constant dense<0.000000e+00> : vector<32x128xf32>
    %4 = tpu.matmul %1, %3, %cst {dimension_numbers = #tpu.dot_dimension_numbers<[1], [0], [0], [1], [0, 0, 1, 1], [], []>} : vector<32x128xbf16>, vector<128x128xbf16>, vector<32x128xf32> -> vector<32x128xf32>
    %c0_4 = arith.constant 0 : index
    %c0_5 = arith.constant 0 : index
    %5 = vector.load %arg3[%c0_4, %c0_5] : memref<1x128xf32, #tpu.memory_space<vmem>>, vector<1x128xf32>
    %6 = vector.broadcast %5 : vector<1x128xf32> to vector<32x128xf32>
    %7 = arith.addf %4, %6 : vector<32x128xf32>
    %cst_6 = arith.constant 0.000000e+00 : f32
    %8 = vector.broadcast %cst_6 : f32 to vector<1x128xf32>
    %c0_7 = arith.constant 0 : index
    %c0_8 = arith.constant 0 : index
    %c0_9 = arith.constant 0 : index
    %9 = vector.load %arg2[%c0_7, %c0_8, %c0_9] : memref<3x128x128xbf16, #tpu.memory_space<vmem>>, vector<1x128x128xbf16>
    %10 = vector.shape_cast %9 : vector<1x128x128xbf16> to vector<128x128xbf16>
    %cst_10 = arith.constant dense<0.000000e+00> : vector<32x128xf32>
    %11 = tpu.matmul %1, %10, %cst_10 {dimension_numbers = #tpu.dot_dimension_numbers<[1], [0], [0], [1], [0, 0, 1, 1], [], []>} : vector<32x128xbf16>, vector<128x128xbf16>, vector<32x128xf32> -> vector<32x128xf32>
    %12 = vector.extract_strided_slice %11 {offsets = [0, 0], sizes = [31, 128], strides = [1, 1]} : vector<32x128xf32> to vector<31x128xf32>
    %13 = tpu.concatenate %8, %12 in 0 : vector<1x128xf32>, vector<31x128xf32> -> vector<32x128xf32>
    %14 = arith.addf %7, %13 : vector<32x128xf32>
    %c2 = arith.constant 2 : index
    %c0_11 = arith.constant 0 : index
    %c0_12 = arith.constant 0 : index
    %15 = vector.load %arg2[%c2, %c0_11, %c0_12] : memref<3x128x128xbf16, #tpu.memory_space<vmem>>, vector<1x128x128xbf16>
    %16 = vector.shape_cast %15 : vector<1x128x128xbf16> to vector<128x128xbf16>
    %cst_13 = arith.constant dense<0.000000e+00> : vector<32x128xf32>
    %17 = tpu.matmul %1, %16, %cst_13 {dimension_numbers = #tpu.dot_dimension_numbers<[1], [0], [0], [1], [0, 0, 1, 1], [], []>} : vector<32x128xbf16>, vector<128x128xbf16>, vector<32x128xf32> -> vector<32x128xf32>
    %18 = vector.extract_strided_slice %17 {offsets = [1, 0], sizes = [31, 128], strides = [1, 1]} : vector<32x128xf32> to vector<31x128xf32>
    %19 = tpu.concatenate %18, %8 in 0 : vector<31x128xf32>, vector<1x128xf32> -> vector<32x128xf32>
    %20 = arith.addf %14, %19 : vector<32x128xf32>
    %cst_14 = arith.constant 0.000000e+00 : f32
    %21 = vector.broadcast %cst_14 : f32 to vector<32x128xf32>
    %22 = arith.maximumf %20, %21 : vector<32x128xf32>
    %c0_15 = arith.constant 0 : index
    %c0_16 = arith.constant 0 : index
    %c0_17 = arith.constant 0 : index
    %23 = vector.load %arg4[%c0_15, %c0_16, %c0_17] : memref<1x32x128xf32, #tpu.memory_space<vmem>>, vector<1x32x128xf32>
    %24 = vector.shape_cast %23 : vector<1x32x128xf32> to vector<32x128xf32>
    %25 = vector.shape_cast %22 : vector<32x128xf32> to vector<1x32x128xf32>
    tpu.vector_store %arg4[%c0_15, %c0_16, %c0_17], %25 {strides = array<i32>} : memref<1x32x128xf32, #tpu.memory_space<vmem>>, vector<1x32x128xf32>,
    return
  }
  func.func @transform_0(%arg0: i32) -> (i32, i32, i32) {
    %c0_i32 = arith.constant 0 : i32
    %c0_i32_0 = arith.constant 0 : i32
    %c0_i32_1 = arith.constant 0 : i32
    return %arg0, %c0_i32, %c0_i32_0 : i32, i32, i32
  }
  func.func @transform_1(%arg0: i32) -> (i32, i32, i32) {
    %c0_i32 = arith.constant 0 : i32
    %c0_i32_0 = arith.constant 0 : i32
    %c0_i32_1 = arith.constant 0 : i32
    %c0_i32_2 = arith.constant 0 : i32
    return %c0_i32, %c0_i32_0, %c0_i32_1 : i32, i32, i32
  }
  func.func @transform_2(%arg0: i32) -> (i32, i32) {
    %c0_i32 = arith.constant 0 : i32
    %c0_i32_0 = arith.constant 0 : i32
    %c0_i32_1 = arith.constant 0 : i32
    return %c0_i32, %c0_i32_0 : i32, i32
  }
  func.func @transform_3(%arg0: i32) -> (i32, i32, i32) {
    %c0_i32 = arith.constant 0 : i32
    %c0_i32_0 = arith.constant 0 : i32
    %c0_i32_1 = arith.constant 0 : i32
    return %arg0, %c0_i32, %c0_i32_0 : i32, i32, i32
  }
}

</mosaic_0001>

<llo_original>
// kernel: tpu_custom_call.1
$region0: #{tpu_custom_call.1}
  #allocation0 [shape = 'u32[]', space=smem, size = 0x4, offset = 0x4, fixed_abs, tag = 'smem constant byte address 0x4 - core index']
  #allocation1 [shape = 'u32[144,128]{1,0:T(1,128)}', space=vmem, size = 0x12000, scoped, tag = 'internal scratch']
  %s0 = inlined_call_operand.hbm [shape: bf16[2,32,128], index: 0, kind: input, shape index: {}]
  %s1 = inlined_call_operand.hbm [shape: bf16[3,128,128], index: 1, kind: input, shape index: {}]
  %s2 = inlined_call_operand.vmem [shape: f32[1,128], index: 2, kind: input, shape index: {}]
  %s3 = inlined_call_operand.hbm [shape: f32[2,32,128], index: 3, kind: output, shape index: {}]
  %s4 = sld [smem:[#allocation0]]
  $region53: #{tpu_custom_call.1} parent=0
    _
  %s6 = ssub.s32 1, %s4
  %s7 = scalar_select 0, %s6, %s4
  $region1: #{tpu_custom_call.1} parent=0
    #allocation2 [shape = 'u8[16384]{0}', space=vmem, size = 0x4000, scoped, tag = 'input window, operand 0']
    #allocation3 [shape = 's32[2]{0}', space=sflag, size = 0x8, scoped, tag = 'scoped memory for tpu_custom_call.1']
    #allocation4 [shape = 's32[2]{0}', space=sflag, size = 0x8, scoped, tag = 'scoped memory for tpu_custom_call.1']
    #allocation5 [shape = 'u8[98304]{0}', space=vmem, size = 0x18000, scoped, tag = 'input window, operand 1, single buffered']
    #allocation6 [shape = 's32[1]{0}', space=sflag, size = 0x4, scoped, tag = 'scoped memory for tpu_custom_call.1']
    #allocation7 [shape = 'u8[32768]{0}', space=vmem, size = 0x8000, scoped, tag = 'output window, operand 0']
    %8 = vsyncpa [#allocation3], 0
    %s9 = scalar_lea.sflag [#allocation3], 1
    %10 = vsyncpa %s9, 0
    %11 = vsyncpa [#allocation6], 0
    %12 = vsyncpa [#allocation4], 0
    %s13 = scalar_lea.sflag [#allocation4], 1
    %14 = vsyncpa %s13, 0
    loop: start=0, step=1, limit=4
    $region2: #{tpu_custom_call.1} parent=1 // loop_pre_header
      _
    $region3: #{tpu_custom_call.1} parent=1 // loop_header
      %s16 = sphi 0, %s20
      %p17 = scmp.ge.s32.totalorder %s16, 4
      %s26 = sphi 0, %s28
      %s29 = sphi 0, %s26
      %s30 = sphi 0, %s29
      %s46 = sphi 0, %s30
      %s50 = sphi 0, %s50
      %s52 = sphi 0, %s50
      %s53 = sphi 0, %s52
      %s67 = sphi 0, %s53
      %s71 = sphi 0, %s71
      %s73 = sphi 0, %s71
      %s74 = sphi 0, %s73
      %s88 = sphi 0, %s74
      %s94 = sphi 0, %s96
      %s97 = sphi 0, %s94
      %s98 = sphi 0, %s97
      %s114 = sphi 0, %s98
    $region4: #{tpu_custom_call.1} parent=1 // loop_header_branch
      %19 = sbr.rel (%p17) target = $region8
    $region5: #{tpu_custom_call.1} parent=1 // loop_body
      %s21 = ssub.s32 %s16, 1
      %s22 = ssub.s32 %s16, 2
      %s23 = sadd.s32 %s16, 1
      %s24 = ssub.s32 %s16, %s23
      %p25 = scmp.eq.s32.totalorder %s24, 0
      %s27 = sadd.s32 %s26, 1
      %s28 = scalar_select %p25, %s26, %s27
      %p31 = pneg %p25
      %p32 = scmp.eq.s32.totalorder %s16, 1
      %p33 = por %p31, %p32
      %p34 = scmp.ne.s32.totalorder %s26, %s29
      %p35 = scmp.eq.s32.totalorder %s16, 0
      %p36 = por %p34, %p35
      %p37 = scmp.ne.s32.totalorder %s26, %s29
      %p38 = scmp.eq.s32.totalorder %s21, 1
      %p39 = por %p37, %p38
      %p40 = scmp.ne.s32.totalorder %s29, %s30
      %p41 = scmp.eq.s32.totalorder %s21, 0
      %p42 = por %p40, %p41
      %p43 = scmp.ne.s32.totalorder %s29, %s30
      %p44 = scmp.eq.s32.totalorder %s22, 1
      %p45 = por %p43, %p44
      %p47 = scmp.ne.s32.totalorder %s30, %s46
      %p48 = scmp.eq.s32.totalorder %s22, 0
      %p49 = por %p47, %p48
      %s51 = sadd.s32 %s50, 1
      %p54 = scmp.eq.s32.totalorder %s16, 1
      %p55 = scmp.ne.s32.totalorder %s50, %s52
      %p56 = scmp.eq.s32.totalorder %s16, 0
      %p57 = por %p55, %p56
      %p58 = scmp.ne.s32.totalorder %s50, %s52
      %p59 = scmp.eq.s32.totalorder %s21, 1
      %p60 = por %p58, %p59
      %p61 = scmp.ne.s32.totalorder %s52, %s53
      %p62 = scmp.eq.s32.totalorder %s21, 0
      %p63 = por %p61, %p62
      %p64 = scmp.ne.s32.totalorder %s52, %s53
      %p65 = scmp.eq.s32.totalorder %s22, 1
      %p66 = por %p64, %p65
      %p68 = scmp.ne.s32.totalorder %s53, %s67
      %p69 = scmp.eq.s32.totalorder %s22, 0
      %p70 = por %p68, %p69
      %s72 = sadd.s32 %s71, 1
      %p75 = scmp.eq.s32.totalorder %s16, 1
      %p76 = scmp.ne.s32.totalorder %s71, %s73
      %p77 = scmp.eq.s32.totalorder %s16, 0
      %p78 = por %p76, %p77
      %p79 = scmp.ne.s32.totalorder %s71, %s73
      %p80 = scmp.eq.s32.totalorder %s21, 1
      %p81 = por %p79, %p80
      %p82 = scmp.ne.s32.totalorder %s73, %s74
      %p83 = scmp.eq.s32.totalorder %s21, 0
      %p84 = por %p82, %p83
      %p85 = scmp.ne.s32.totalorder %s73, %s74
      %p86 = scmp.eq.s32.totalorder %s22, 1
      %p87 = por %p85, %p86
      %p89 = scmp.ne.s32.totalorder %s74, %s88
      %p90 = scmp.eq.s32.totalorder %s22, 0
      %p91 = por %p89, %p90
      %s92 = ssub.s32 %s16, %s23
      %p93 = scmp.eq.s32.totalorder %s92, 0
      %s95 = sadd.s32 %s94, 1
      %s96 = scalar_select %p93, %s94, %s95
      %p99 = pneg %p93
      %p100 = scmp.eq.s32.totalorder %s16, 1
      %p101 = por %p99, %p100
      %p102 = scmp.ne.s32.totalorder %s94, %s97
      %p103 = scmp.eq.s32.totalorder %s16, 0
      %p104 = por %p102, %p103
      %p105 = scmp.ne.s32.totalorder %s94, %s97
      %p106 = scmp.eq.s32.totalorder %s21, 1
      %p107 = por %p105, %p106
      %p108 = scmp.ne.s32.totalorder %s97, %s98
      %p109 = scmp.eq.s32.totalorder %s21, 0
      %p110 = por %p108, %p109
      %p111 = scmp.ne.s32.totalorder %s97, %s98
      %p112 = scmp.eq.s32.totalorder %s22, 1
      %p113 = por %p111, %p112
      %p115 = scmp.ne.s32.totalorder %s98, %s114
      %p116 = scmp.eq.s32.totalorder %s22, 0
      %p117 = por %p115, %p116
      %p118 = scmp.le.s32.totalorder 1, %s16
      %p119 = scmp.lt.s32.totalorder %s16, 3
      %p120 = pnand %p118, %p119
      %p121 = pneg %p120
      // Predicated region
      $region9: #{tpu_custom_call.1} parent=5 // pred_check
        _
      $region10: #{tpu_custom_call.1} parent=5 // pred_check_branch
        %123 = sbr.rel (%p120) target = $region12
      $region11: #{tpu_custom_call.1} parent=5 // pred_region
        %s124 = ssub.s32 %s16, 1
        // Predicated region
        $region13: #{tpu_custom_call.1} parent=11 // pred_check
          %p125 = pneg %p63
        $region14: #{tpu_custom_call.1} parent=11 // pred_check_branch
          %127 = sbr.rel (%p125) target = $region16
        $region15: #{tpu_custom_call.1} parent=11 // pred_region
          %s129 = ssub.s32 3072, 3072
          %130 = vsyncadd [#allocation6], %s129
          %s131 = sshll.u32 [#allocation5], 4
          %s132 = int_to_ptr.vmem [resolvable:$true] %s131
          %137 = dma.hbm_to_vmem [thread:$0]  %s1, 3072, %s132, [#allocation6], 64, 64, 4
        $region16: #{tpu_custom_call.1} parent=11 // pred_fallthru
          _
        // Predicated region
        $region17: #{tpu_custom_call.1} parent=11 // pred_check
          %p138 = pneg %p84
        $region18: #{tpu_custom_call.1} parent=11 // pred_check_branch
          %140 = sbr.rel (%p138) target = $region20
        $region19: #{tpu_custom_call.1} parent=11 // pred_region
          _
        $region20: #{tpu_custom_call.1} parent=11 // pred_fallthru
          _
      $region12: #{tpu_custom_call.1} parent=5 // pred_fallthru
        _
      %p141 = scmp.lt.s32.totalorder %s16, 2
      // Predicated region
      $region21: #{tpu_custom_call.1} parent=5 // pred_check
        %p142 = pneg %p141
      $region22: #{tpu_custom_call.1} parent=5 // pred_check_branch
        %144 = sbr.rel (%p142) target = $region24
      $region23: #{tpu_custom_call.1} parent=5 // pred_region
        // Predicated region
        $region25: #{tpu_custom_call.1} parent=23 // pred_check
          %p145 = pneg %p36
        $region26: #{tpu_custom_call.1} parent=23 // pred_check_branch
          %147 = sbr.rel (%p145) target = $region28
        $region27: #{tpu_custom_call.1} parent=23 // pred_region
          %s148 = sand.u32 %s26, 1
          %s149 = scalar_lea.sflag [#allocation3], %s148
          %s150 = sand.u32 %s26, 1
          %s151 = smul.addr %s150, 16
          %s152 = scalar_lea.vmem [#allocation2], %s151
          %s154 = ssub.s32 256, 256
          %155 = vsyncadd %s149, %s154
          %s156 = smul.addr %s16, 4
          %s157 = smul.addr %s156, 64
          %s158 = scalar_lea.hbm %s0, %s157
          %s159 = sshll.u32 %s152, 4
          %s160 = int_to_ptr.vmem [resolvable:$true] %s159
          %165 = dma.hbm_to_vmem [thread:$0]  %s158, 256, %s160, %s149, 64, 64, 4
        $region28: #{tpu_custom_call.1} parent=23 // pred_fallthru
          _
      $region24: #{tpu_custom_call.1} parent=5 // pred_fallthru
        _
      %p166 = scmp.le.s32.totalorder 1, %s16
      %p167 = scmp.lt.s32.totalorder %s16, 3
      %p168 = pnand %p166, %p167
      %p169 = pneg %p168
      // Predicated region
      $region29: #{tpu_custom_call.1} parent=5 // pred_check
        _
      $region30: #{tpu_custom_call.1} parent=5 // pred_check_branch
        %171 = sbr.rel (%p168) target = $region32
      $region31: #{tpu_custom_call.1} parent=5 // pred_region
        %s172 = ssub.s32 %s16, 1
        %s173 = sand.u32 %s29, 1
        %s174 = scalar_lea.sflag [#allocation3], %s173
        %s175 = sand.u32 %s29, 1
        %s176 = smul.addr %s175, 16
        %s177 = scalar_lea.vmem [#allocation2], %s176
        // Predicated region
        $region33: #{tpu_custom_call.1} parent=31 // pred_check
          %p178 = pneg %p42
        $region34: #{tpu_custom_call.1} parent=31 // pred_check_branch
          %180 = sbr.rel (%p178) target = $region36
        $region35: #{tpu_custom_call.1} parent=31 // pred_region
          %181 = dma.done %s174, 256
        $region36: #{tpu_custom_call.1} parent=31 // pred_fallthru
          _
        // Predicated region
        $region37: #{tpu_custom_call.1} parent=31 // pred_check
          %p182 = pneg %p63
        $region38: #{tpu_custom_call.1} parent=31 // pred_check_branch
          %184 = sbr.rel (%p182) target = $region40
        $region39: #{tpu_custom_call.1} parent=31 // pred_region
          %185 = dma.done [#allocation6], 3072
        $region40: #{tpu_custom_call.1} parent=31 // pred_fallthru
          _
        %s186 = sand.u32 %s29, 1
        %s187 = scalar_lea.sflag [#allocation3], %s186
        %s188 = sand.u32 %s29, 1
        %s189 = smul.addr %s188, 16
        %s190 = scalar_lea.vmem [#allocation2], %s189
        %p191 = pneg %p42
        %p192 = pneg %p39
        %p193 = pneg %p63
        %p194 = pneg %p60
        %p195 = pneg %p84
        %p196 = pneg %p81
        %p197 = pneg %p110
        %p198 = pneg %p107
        %s199 = sand.u32 %s97, 1
        %s200 = scalar_lea.sflag [#allocation4], %s199
        %s201 = sand.u32 %s97, 1
        %s202 = smul.addr %s201, 32
        %s203 = scalar_lea.vmem [#allocation7], %s202
        %v205 = vld [vmem:[%s177] sm:$0xf]
        %v206 = vld [vmem:[%s177 + $0x4] sm:$0xf]
        %v207 = vld [vmem:[%s177 + $0x8] sm:$0xf]
        %v208 = vld [vmem:[%s177 + $0xc] sm:$0xf]
        %s209 = scalar_lea.vmem [#allocation5], 64
        %v210 = vld [vmem:[%s209] sm:$0xf]
        %v211 = vld [vmem:[%s209 + $0x4] sm:$0xf]
        %v212 = vld [vmem:[%s209 + $0x8] sm:$0xf]
        %v213 = vld [vmem:[%s209 + $0xc] sm:$0xf]
        %v214 = vld [vmem:[%s209 + $0x10] sm:$0xf]
        %v215 = vld [vmem:[%s209 + $0x14] sm:$0xf]
        %v216 = vld [vmem:[%s209 + $0x18] sm:$0xf]
        %v217 = vld [vmem:[%s209 + $0x1c] sm:$0xf]
        %v218 = vld [vmem:[%s209 + $0x20] sm:$0xf]
        %v219 = vld [vmem:[%s209 + $0x24] sm:$0xf]
        %v220 = vld [vmem:[%s209 + $0x28] sm:$0xf]
        %v221 = vld [vmem:[%s209 + $0x2c] sm:$0xf]
        %v222 = vld [vmem:[%s209 + $0x30] sm:$0xf]
        %v223 = vld [vmem:[%s209 + $0x34] sm:$0xf]
        %v224 = vld [vmem:[%s209 + $0x38] sm:$0xf]
        %v225 = vld [vmem:[%s209 + $0x3c] sm:$0xf]
        %v226 = vld [vmem:[%s2] sm:$0x1]
        %v228 = vlaneseq
        %v229 = vshrl.u32 %v228, 7
        %v230 = vsub.s32 0, %v229
        %v231 = vrot.slane %v226, %v230
        %v237 = vunpack.c.l.b16 %v205
        %v238 = vunpack.c.l.b16 %v206
        %v239 = vunpack.c.l.b16 %v207
        %v240 = vunpack.c.l.b16 %v208
        %v241 = vpack.c.b16 %v238, %v237
        %v242 = vpack.c.b16 %v240, %v239
        %v261 = vunpack.c.l.b16 %v210
        %v262 = vunpack.c.l.b16 %v211
        %v263 = vunpack.c.l.b16 %v212
        %v264 = vunpack.c.l.b16 %v213
        %v265 = vunpack.c.l.b16 %v214
        %v266 = vunpack.c.l.b16 %v215
        %v267 = vunpack.c.l.b16 %v216
        %v268 = vunpack.c.l.b16 %v217
        %v269 = vunpack.c.l.b16 %v218
        %v270 = vunpack.c.l.b16 %v219
        %v271 = vunpack.c.l.b16 %v220
        %v272 = vunpack.c.l.b16 %v221
        %v273 = vunpack.c.l.b16 %v222
        %v274 = vunpack.c.l.b16 %v223
        %v275 = vunpack.c.l.b16 %v224
        %v276 = vunpack.c.l.b16 %v225
        %v277 = vpack.c.b16 %v262, %v261
        %v278 = vpack.c.b16 %v264, %v263
        %v279 = vpack.c.b16 %v266, %v265
        %v280 = vpack.c.b16 %v268, %v267
        %v281 = vpack.c.b16 %v270, %v269
        %v282 = vpack.c.b16 %v272, %v271
        %v283 = vpack.c.b16 %v274, %v273
        %v284 = vpack.c.b16 %v276, %v275
        %293 = vmatprep.subr.bf16.mxu0 0
        %294 = vmatpush1.bf16.msra.mxu0 %v284
        %295 = vmatprep.subr.bf16.mxu0 0
        %296 = vmatpush1.bf16.msra.mxu0 %v283
        %297 = vmatprep.subr.bf16.mxu0 0
        %298 = vmatpush1.bf16.msra.mxu0 %v282
        %299 = vmatprep.subr.bf16.mxu0 0
        %300 = vmatpush1.bf16.msra.mxu0 %v281
        %301 = vmatprep.subr.bf16.mxu0 0
        %302 = vmatpush1.bf16.msra.mxu0 %v280
        %303 = vmatprep.subr.bf16.mxu0 0
        %304 = vmatpush1.bf16.msra.mxu0 %v279
        %305 = vmatprep.subr.bf16.mxu0 0
        %306 = vmatpush1.bf16.msra.mxu0 %v278
        %307 = vmatprep.subr.bf16.mxu0 0
        %308 = vmatpush1.bf16.msra.mxu0 %v277
        %309 = vmatprep.subr.bf16.mxu0 0
        %310 = vmatpush2.bf16.msra.mxu0 0
        %311 = vmatprep.subr.bf16.mxu0 0
        %312 = vmatpush2.bf16.msra.mxu0 0
        %313 = vmatprep.subr.bf16.mxu0 0
        %314 = vmatpush2.bf16.msra.mxu0 0
        %315 = vmatprep.subr.bf16.mxu0 0
        %316 = vmatpush2.bf16.msra.mxu0 0
        %317 = vmatprep.subr.bf16.mxu0 0
        %318 = vmatpush2.bf16.msra.mxu0 0
        %319 = vmatprep.subr.bf16.mxu0 0
        %320 = vmatpush2.bf16.msra.mxu0 0
        %321 = vmatprep.subr.bf16.mxu0 0
        %322 = vmatpush2.bf16.msra.mxu0 0
        %323 = vmatprep.subr.bf16.mxu0 0
        %324 = vmatpush2.bf16.msra.mxu0 0
        %325 = vmatprep.mubr.bf16.mxu0 0
        %326 = vmatmul.mubr.bf16.gmra.mxu0 %v241
        %v327 = vpop.f32.mrf.mxu0
        %v328 = vadd.f32 %v231, %v327
        %v329 = vpop.f32.mrf.mxu0
        %v330 = vpop.f32.mrf.mxu0
        %v331 = vadd.f32 %v231, %v330
        %v332 = vpop.f32.mrf.mxu0
        %333 = vmatprep.mubr.bf16.mxu0 0
        %334 = vmatmul.mubr.bf16.gmra.mxu0 %v242
        %v335 = vpop.f32.mrf.mxu0
        %v336 = vadd.f32 %v231, %v335
        %v337 = vpop.f32.mrf.mxu0
        %v338 = vpop.f32.mrf.mxu0
        %v339 = vadd.f32 %v231, %v338
        %v340 = vpop.f32.mrf.mxu0
        %341 = vdwg.mxu0
        %v342 = vld [vmem:[#allocation5] sm:$0xf]
        %v343 = vld [vmem:[#allocation5 + $0x4] sm:$0xf]
        %v344 = vld [vmem:[#allocation5 + $0x8] sm:$0xf]
        %v345 = vld [vmem:[#allocation5 + $0xc] sm:$0xf]
        %v346 = vld [vmem:[#allocation5 + $0x10] sm:$0xf]
        %v347 = vld [vmem:[#allocation5 + $0x14] sm:$0xf]
        %v348 = vld [vmem:[#allocation5 + $0x18] sm:$0xf]
        %v349 = vld [vmem:[#allocation5 + $0x1c] sm:$0xf]
        %v350 = vld [vmem:[#allocation5 + $0x20] sm:$0xf]
        %v351 = vld [vmem:[#allocation5 + $0x24] sm:$0xf]
        %v352 = vld [vmem:[#allocation5 + $0x28] sm:$0xf]
        %v353 = vld [vmem:[#allocation5 + $0x2c] sm:$0xf]
        %v354 = vld [vmem:[#allocation5 + $0x30] sm:$0xf]
        %v355 = vld [vmem:[#allocation5 + $0x34] sm:$0xf]
        %v356 = vld [vmem:[#allocation5 + $0x38] sm:$0xf]
        %v357 = vld [vmem:[#allocation5 + $0x3c] sm:$0xf]
        %v374 = vunpack.c.l.b16 %v342
        %v375 = vunpack.c.l.b16 %v343
        %v376 = vunpack.c.l.b16 %v344
        %v377 = vunpack.c.l.b16 %v345
        %v378 = vunpack.c.l.b16 %v346
        %v379 = vunpack.c.l.b16 %v347
        %v380 = vunpack.c.l.b16 %v348
        %v381 = vunpack.c.l.b16 %v349
        %v382 = vunpack.c.l.b16 %v350
        %v383 = vunpack.c.l.b16 %v351
        %v384 = vunpack.c.l.b16 %v352
        %v385 = vunpack.c.l.b16 %v353
        %v386 = vunpack.c.l.b16 %v354
        %v387 = vunpack.c.l.b16 %v355
        %v388 = vunpack.c.l.b16 %v356
        %v389 = vunpack.c.l.b16 %v357
        %v390 = vpack.c.b16 %v375, %v374
        %v391 = vpack.c.b16 %v377, %v376
        %v392 = vpack.c.b16 %v379, %v378
        %v393 = vpack.c.b16 %v381, %v380
        %v394 = vpack.c.b16 %v383, %v382
        %v395 = vpack.c.b16 %v385, %v384
        %v396 = vpack.c.b16 %v387, %v386
        %v397 = vpack.c.b16 %v389, %v388
        %406 = vmatprep.subr.bf16.mxu0 0
        %407 = vmatpush1.bf16.msra.mxu0 %v397
        %408 = vmatprep.subr.bf16.mxu0 0
        %409 = vmatpush1.bf16.msra.mxu0 %v396
        %410 = vmatprep.subr.bf16.mxu0 0
        %411 = vmatpush1.bf16.msra.mxu0 %v395
        %412 = vmatprep.subr.bf16.mxu0 0
        %413 = vmatpush1.bf16.msra.mxu0 %v394
        %414 = vmatprep.subr.bf16.mxu0 0
        %415 = vmatpush1.bf16.msra.mxu0 %v393
        %416 = vmatprep.subr.bf16.mxu0 0
        %417 = vmatpush1.bf16.msra.mxu0 %v392
        %418 = vmatprep.subr.bf16.mxu0 0
        %419 = vmatpush1.bf16.msra.mxu0 %v391
        %420 = vmatprep.subr.bf16.mxu0 0
        %421 = vmatpush1.bf16.msra.mxu0 %v390
        %422 = vmatprep.subr.bf16.mxu0 0
        %423 = vmatpush2.bf16.msra.mxu0 0
        %424 = vmatprep.subr.bf16.mxu0 0
        %425 = vmatpush2.bf16.msra.mxu0 0
        %426 = vmatprep.subr.bf16.mxu0 0
        %427 = vmatpush2.bf16.msra.mxu0 0
        %428 = vmatprep.subr.bf16.mxu0 0
        %429 = vmatpush2.bf16.msra.mxu0 0
        %430 = vmatprep.subr.bf16.mxu0 0
        %431 = vmatpush2.bf16.msra.mxu0 0
        %432 = vmatprep.subr.bf16.mxu0 0
        %433 = vmatpush2.bf16.msra.mxu0 0
        %434 = vmatprep.subr.bf16.mxu0 0
        %435 = vmatpush2.bf16.msra.mxu0 0
        %436 = vmatprep.subr.bf16.mxu0 0
        %437 = vmatpush2.bf16.msra.mxu0 0
        %438 = vmatprep.mubr.bf16.mxu0 0
        %439 = vmatmul.mubr.bf16.gmra.mxu0 %v241
        %v440 = vpop.f32.mrf.mxu0
        %v441 = vadd.f32 0.0, %v440
        %v442 = vpop.f32.mrf.mxu0
        %v443 = vpop.f32.mrf.mxu0
        %v444 = vadd.f32 0.0, %v443
        %v445 = vpop.f32.mrf.mxu0
        %446 = vmatprep.mubr.bf16.mxu0 0
        %447 = vmatmul.mubr.bf16.gmra.mxu0 %v242
        %v448 = vpop.f32.mrf.mxu0
        %v449 = vadd.f32 0.0, %v448
        %v450 = vpop.f32.mrf.mxu0
        %v451 = vpop.f32.mrf.mxu0
        %v452 = vadd.f32 0.0, %v451
        %v453 = vpop.f32.mrf.mxu0
        %454 = vdwg.mxu0
        %vm459 = vcmask 1040384
        %v460 = vrot.slane %v441, 7
        %v461 = vrot.slane %v444, 7
        %v462 = vsel %vm459, %v460, %v461
        %v463 = vrot.slane %v449, 7
        %v464 = vsel %vm459, %v461, %v463
        %v465 = vrot.slane %v452, 7
        %v466 = vsel %vm459, %v463, %v465
        %v471 = vsel %vm459, 0.0, %v460
        %v472 = vadd.f32 %v328, %v471
        %v473 = vadd.f32 %v331, %v462
        %v474 = vadd.f32 %v336, %v464
        %v475 = vadd.f32 %v339, %v466
        %s476 = scalar_lea.vmem [#allocation5], 128
        %v477 = vld [vmem:[%s476] sm:$0xf]
        %v478 = vld [vmem:[%s476 + $0x4] sm:$0xf]
        %v479 = vld [vmem:[%s476 + $0x8] sm:$0xf]
        %v480 = vld [vmem:[%s476 + $0xc] sm:$0xf]
        %v481 = vld [vmem:[%s476 + $0x10] sm:$0xf]
        %v482 = vld [vmem:[%s476 + $0x14] sm:$0xf]
        %v483 = vld [vmem:[%s476 + $0x18] sm:$0xf]
        %v484 = vld [vmem:[%s476 + $0x1c] sm:$0xf]
        %v485 = vld [vmem:[%s476 + $0x20] sm:$0xf]
        %v486 = vld [vmem:[%s476 + $0x24] sm:$0xf]
        %v487 = vld [vmem:[%s476 + $0x28] sm:$0xf]
        %v488 = vld [vmem:[%s476 + $0x2c] sm:$0xf]
        %v489 = vld [vmem:[%s476 + $0x30] sm:$0xf]
        %v490 = vld [vmem:[%s476 + $0x34] sm:$0xf]
        %v491 = vld [vmem:[%s476 + $0x38] sm:$0xf]
        %v492 = vld [vmem:[%s476 + $0x3c] sm:$0xf]
        %v509 = vunpack.c.l.b16 %v477
        %v510 = vunpack.c.l.b16 %v478
        %v511 = vunpack.c.l.b16 %v479
        %v512 = vunpack.c.l.b16 %v480
        %v513 = vunpack.c.l.b16 %v481
        %v514 = vunpack.c.l.b16 %v482
        %v515 = vunpack.c.l.b16 %v483
        %v516 = vunpack.c.l.b16 %v484
        %v517 = vunpack.c.l.b16 %v485
        %v518 = vunpack.c.l.b16 %v486
        %v519 = vunpack.c.l.b16 %v487
        %v520 = vunpack.c.l.b16 %v488
        %v521 = vunpack.c.l.b16 %v489
        %v522 = vunpack.c.l.b16 %v490
        %v523 = vunpack.c.l.b16 %v491
        %v524 = vunpack.c.l.b16 %v492
        %v525 = vpack.c.b16 %v510, %v509
        %v526 = vpack.c.b16 %v512, %v511
        %v527 = vpack.c.b16 %v514, %v513
        %v528 = vpack.c.b16 %v516, %v515
        %v529 = vpack.c.b16 %v518, %v517
        %v530 = vpack.c.b16 %v520, %v519
        %v531 = vpack.c.b16 %v522, %v521
        %v532 = vpack.c.b16 %v524, %v523
        %541 = vmatprep.subr.bf16.mxu0 0
        %542 = vmatpush1.bf16.msra.mxu0 %v532
        %543 = vmatprep.subr.bf16.mxu0 0
        %544 = vmatpush1.bf16.msra.mxu0 %v531
        %545 = vmatprep.subr.bf16.mxu0 0
        %546 = vmatpush1.bf16.msra.mxu0 %v530
        %547 = vmatprep.subr.bf16.mxu0 0
        %548 = vmatpush1.bf16.msra.mxu0 %v529
        %549 = vmatprep.subr.bf16.mxu0 0
        %550 = vmatpush1.bf16.msra.mxu0 %v528
        %551 = vmatprep.subr.bf16.mxu0 0
        %552 = vmatpush1.bf16.msra.mxu0 %v527
        %553 = vmatprep.subr.bf16.mxu0 0
        %554 = vmatpush1.bf16.msra.mxu0 %v526
        %555 = vmatprep.subr.bf16.mxu0 0
        %556 = vmatpush1.bf16.msra.mxu0 %v525
        %557 = vmatprep.subr.bf16.mxu0 0
        %558 = vmatpush2.bf16.msra.mxu0 0
        %559 = vmatprep.subr.bf16.mxu0 0
        %560 = vmatpush2.bf16.msra.mxu0 0
        %561 = vmatprep.subr.bf16.mxu0 0
        %562 = vmatpush2.bf16.msra.mxu0 0
        %563 = vmatprep.subr.bf16.mxu0 0
        %564 = vmatpush2.bf16.msra.mxu0 0
        %565 = vmatprep.subr.bf16.mxu0 0
        %566 = vmatpush2.bf16.msra.mxu0 0
        %567 = vmatprep.subr.bf16.mxu0 0
        %568 = vmatpush2.bf16.msra.mxu0 0
        %569 = vmatprep.subr.bf16.mxu0 0
        %570 = vmatpush2.bf16.msra.mxu0 0
        %571 = vmatprep.subr.bf16.mxu0 0
        %572 = vmatpush2.bf16.msra.mxu0 0
        %573 = vmatprep.mubr.bf16.mxu0 0
        %574 = vmatmul.mubr.bf16.gmra.mxu0 %v241
        %v575 = vpop.f32.mrf.mxu0
        %v576 = vadd.f32 0.0, %v575
        %v577 = vpop.f32.mrf.mxu0
        %v578 = vpop.f32.mrf.mxu0
        %v579 = vadd.f32 0.0, %v578
        %v580 = vpop.f32.mrf.mxu0
        %581 = vmatprep.mubr.bf16.mxu0 0
        %582 = vmatmul.mubr.bf16.gmra.mxu0 %v242
        %v583 = vpop.f32.mrf.mxu0
        %v584 = vadd.f32 0.0, %v583
        %v585 = vpop.f32.mrf.mxu0
        %v586 = vpop.f32.mrf.mxu0
        %v587 = vadd.f32 0.0, %v586
        %v588 = vpop.f32.mrf.mxu0
        %589 = vdwg.mxu0
        %vm594 = vcmask 1046528
        %v595 = vrot.slane %v576, 1
        %v596 = vrot.slane %v579, 1
        %v597 = vsel %vm594, %v595, %v596
        %v598 = vrot.slane %v584, 1
        %v599 = vsel %vm594, %v596, %v598
        %v600 = vrot.slane %v587, 1
        %v601 = vsel %vm594, %v598, %v600
        %v606 = vsel %vm594, %v600, 0.0
        %v607 = vadd.f32 %v472, %v597
        %v608 = vadd.f32 %v473, %v599
        %v609 = vadd.f32 %v474, %v601
        %v610 = vadd.f32 %v475, %v606
        %v611 = vmax.f32 %v607, 0.0
        %v612 = vmax.f32 %v608, 0.0
        %v613 = vmax.f32 %v609, 0.0
        %v614 = vmax.f32 %v610, 0.0
        %615 = vst [vmem:[%s203] sm:$0xff] %v611
        %616 = vst [vmem:[%s203 + $0x8] sm:$0xff] %v612
        %617 = vst [vmem:[%s203 + $0x10] sm:$0xff] %v613
        %618 = vst [vmem:[%s203 + $0x18] sm:$0xff] %v614
        %s619 = sand.u32 %s97, 1
        %s620 = scalar_lea.sflag [#allocation4], %s619
        %s621 = sand.u32 %s97, 1
        %s622 = smul.addr %s621, 32
        %s623 = scalar_lea.vmem [#allocation7], %s622
        // Predicated region
        $region41: #{tpu_custom_call.1} parent=31 // pred_check
          %p624 = pneg %p107
        $region42: #{tpu_custom_call.1} parent=31 // pred_check_branch
          %626 = sbr.rel (%p624) target = $region44
        $region43: #{tpu_custom_call.1} parent=31 // pred_region
          %s628 = ssub.s32 512, 512
          %629 = vsyncadd %s620, %s628
          %s630 = smul.addr %s21, 4
          %s631 = smul.addr %s630, 128
          %s632 = scalar_lea.hbm %s3, %s631
          %s633 = sshll.u32 %s623, 4
          %s634 = int_to_ptr.vmem [resolvable:$true] %s633
          %639 = dma.vmem_to_hbm [thread:$0]  %s634, 512, %s632, %s620, 128, 128, 8
        $region44: #{tpu_custom_call.1} parent=31 // pred_fallthru
          _
      $region32: #{tpu_custom_call.1} parent=5 // pred_fallthru
        _
      %p640 = scmp.le.s32.totalorder 2, %s16
      // Predicated region
      $region45: #{tpu_custom_call.1} parent=5 // pred_check
        %p641 = pneg %p640
      $region46: #{tpu_custom_call.1} parent=5 // pred_check_branch
        %643 = sbr.rel (%p641) target = $region48
      $region47: #{tpu_custom_call.1} parent=5 // pred_region
        %s644 = ssub.s32 %s16, 2
        // Predicated region
        $region49: #{tpu_custom_call.1} parent=47 // pred_check
          %p645 = pneg %p113
        $region50: #{tpu_custom_call.1} parent=47 // pred_check_branch
          %647 = sbr.rel (%p645) target = $region52
        $region51: #{tpu_custom_call.1} parent=47 // pred_region
          %s648 = sand.u32 %s98, 1
          %s649 = scalar_lea.sflag [#allocation4], %s648
          %s650 = sand.u32 %s98, 1
          %s651 = smul.addr %s650, 32
          %s652 = scalar_lea.vmem [#allocation7], %s651
          %653 = dma.done %s649, 512
        $region52: #{tpu_custom_call.1} parent=47 // pred_fallthru
          _
      $region48: #{tpu_custom_call.1} parent=5 // pred_fallthru
        _
    $region6: #{tpu_custom_call.1} parent=1 // loop_footer
      %s20 = sadd.s32 1, %s16
    $region7: #{tpu_custom_call.1} parent=1 // loop_footer_branch
      %15 = sbr.rel target = $region3
    $region8: #{tpu_custom_call.1} parent=1 // loop_exit
      _
    %654 = vsyncpa [#allocation3], 1
    %s655 = scalar_lea.sflag [#allocation3], 1
    %656 = vsyncpa %s655, 1
    %657 = vsyncpa [#allocation6], 1
    %658 = vsyncpa [#allocation4], 1
    %s659 = scalar_lea.sflag [#allocation4], 1
    %660 = vsyncpa %s659, 1

</llo_original>
